<compile_context>
chip_gen: v7x
topology: tpu7x:2x2x1
jax: 0.10.0
libtpu: 0.0.40
codegen_flags: <defaults>
</compile_context>

<pallas_src>
import functools

import jax
import jax.numpy as jnp
from jax.experimental import pallas as pl
from jax.experimental.pallas import tpu as pltpu


def _dense_layer_kernel(x_ref, w_ref, b_ref, o_ref, *, H, W, Cin,
                        tap_dtype, mxu_dtype):
    # x_ref: (B, Cin_pad, HW)       f32   B images, spatial flattened onto lanes
    # w_ref: (Cout, 9*Cin_pad)      bf16  fused conv weights, tap-major / cin-minor
    # b_ref: (Cout, 1)              f32
    # o_ref: (B, Cin+Cout, HW)      f32   fused [x ; relu(conv(x))] output (NCHW-flat)
    B = x_ref.shape[0]
    HW = H * W

    xfull = x_ref[...]                                       # (B, Cin_pad, HW) f32

    # Pass-through channels: exact f32 copy, stored directly (no output-wide concat).
    o_ref[:, :Cin, :] = xfull[:, :Cin, :]

    xb = xfull.astype(tap_dtype)                             # taps built in tap_dtype

    # Position-only border masks at (1, 1, HW); broadcast over batch & channels.
    p = jax.lax.broadcasted_iota(jnp.int32, (1, 1, HW), 2)
    # TODO(synk): for non-power-of-two W, pass precomputed masks from the wrapper
    # instead of the in-kernel integer '% W'.
    col = (p & (W - 1)) if (W & (W - 1)) == 0 else (p % W)
    first_col = col == 0
    last_col = col == (W - 1)
    first_row = p < W
    last_row = p >= HW - W

    # Column (dx) shifts: static jnp.roll lowers to lane rotates; the where replicates
    # the border column (ReplicationPad2d behaviour).
    cs = (
        jnp.where(first_col, xb, jnp.roll(xb, 1, axis=-1)),  # dx offset -1
        xb,                                                  # dx offset  0
        jnp.where(last_col, xb, jnp.roll(xb, -1, axis=-1)),  # dx offset +1
    )

    # Row (dy) shifts (= lane shift by W) on each column-shifted plane -> 9 taps.
    taps = []
    for oy in (-1, 0, 1):
        for c in cs:
            if oy == -1:
                taps.append(jnp.where(first_row, c, jnp.roll(c, W, axis=-1)))
            elif oy == 1:
                taps.append(jnp.where(last_row, c, jnp.roll(c, -W, axis=-1)))
            else:
                taps.append(c)

    # Cin_pad is sublane-aligned, so this concat is plain full-vreg moves.
    patches = jnp.concatenate(taps, axis=1).astype(mxu_dtype)   # (B, 9*Cin_pad, HW)

    w = w_ref[...]                                               # (Cout, 9*Cin_pad)
    b = b_ref[...]                                               # (Cout, 1) f32

    # One fused im2col MXU matmul per image (static unroll over the batch tile),
    # f32 accumulation; bias + ReLU epilogue stays f32.
    for i in range(B):
        acc = jnp.dot(w, patches[i], preferred_element_type=jnp.float32)  # (Cout, HW)
        conv = jnp.maximum(acc + b, 0.0)
        o_ref[i, Cin:, :] = conv.astype(o_ref.dtype)


def _pick_batch_tile(n, max_tile=8):
    divisors = [t for t in range(1, min(n, max_tile) + 1) if n % t == 0]
    # Prefer the largest tile that still leaves >=2 grid steps (keeps both v7x
    # TensorCores busy via the "parallel" axis); otherwise take the largest divisor.
    for t in reversed(divisors):
        if n // t >= 2:
            return t
    return divisors[-1]


def dense_layer_forward(x_nchw, weight_oihw, bias, *,
                        mxu_dtype=jnp.bfloat16,
                        tap_dtype=jnp.bfloat16,   # use jnp.float32 on v5e (no bf16 VALU)
                        batch_tile=None):
    """Pallas equivalent of DenseLayer.forward.

    x_nchw:      (N, Cin, H, W)    float32
    weight_oihw: (Cout, Cin, 3, 3) float32 (PyTorch Conv2d layout)
    bias:        (Cout,)           float32
    returns:     (N, Cin+Cout, H, W) float32
    """
    N, Cin, H, W = x_nchw.shape
    Cout = weight_oihw.shape[0]
    HW = H * W

    # Sublane-align the per-tap channel count so the in-kernel 9-tap concat is
    # vreg-aligned: 8 rows/vreg for 4-byte taps, 16 for 2-byte taps.
    sub = 8 if jnp.dtype(tap_dtype).itemsize >= 4 else 16
    Cin_pad = ((Cin + sub - 1) // sub) * sub

    if batch_tile is None:
        batch_tile = _pick_batch_tile(N)
    assert N % batch_tile == 0, (N, batch_tile)

    # Only free reshapes plus (if needed) a tiny zero-pad of the channel dim here --
    # no transpose / replication-pad / concatenate HBM round trips.
    x_flat = x_nchw.reshape(N, Cin, HW)
    if Cin_pad != Cin:
        x_flat = jnp.pad(x_flat, ((0, 0), (0, Cin_pad - Cin), (0, 0)))

    # (Cout, Cin, ky, kx) -> (Cout, ky, kx, Cin[_pad]) -> (Cout, 9*Cin_pad); row order
    # matches the tap order built in-kernel (dy-major, dx-minor, cin contiguous).
    w = jnp.transpose(weight_oihw, (0, 2, 3, 1))
    if Cin_pad != Cin:
        w = jnp.pad(w, ((0, 0), (0, 0), (0, 0), (0, Cin_pad - Cin)))
    w_mat = w.reshape(Cout, 9 * Cin_pad).astype(mxu_dtype)   # bf16 MXU operand
    b_col = bias.astype(jnp.float32).reshape(Cout, 1)

    kernel = functools.partial(_dense_layer_kernel, H=H, W=W, Cin=Cin,
                               tap_dtype=tap_dtype, mxu_dtype=mxu_dtype)

    # TODO(synk): for DenseNet-scale H*W with tiny N, add a row-tiled grid axis
    # ((batch, row_tile) blocks with a 1-row halo) so per-step blocks stay within
    # v7x's 64 MiB VMEM and both v7x TensorCores stay busy even when the grid would
    # otherwise have a single step.
    out_flat = pl.pallas_call(
        kernel,
        out_shape=jax.ShapeDtypeStruct((N, Cin + Cout, HW), x_nchw.dtype),
        grid_spec=pltpu.PrefetchScalarGridSpec(
            num_scalar_prefetch=0,
            grid=(N // batch_tile,),
            in_specs=[
                pl.BlockSpec((batch_tile, Cin_pad, HW), lambda n: (n, 0, 0)),
                pl.BlockSpec((Cout, 9 * Cin_pad), lambda n: (0, 0)),
                pl.BlockSpec((Cout, 1), lambda n: (0, 0)),
            ],
            out_specs=pl.BlockSpec((batch_tile, Cin + Cout, HW),
                                   lambda n: (n, 0, 0)),
        ),
        compiler_params=pltpu.CompilerParams(
            dimension_semantics=("parallel",),
            vmem_limit_bytes=32 * 1024 * 1024,
        ),
    )(x_flat, w_mat, b_col)

    return out_flat.reshape(N, Cin + Cout, H, W)


def init_params(key, in_channels, out_channels):
    # Deterministic synthetic init (shapes match nn.Conv2d(in, out, 3)).
    kw, kb = jax.random.split(key)
    fan_in = in_channels * 3 * 3
    bound = 1.0 / (fan_in ** 0.5)
    weight = jax.random.uniform(kw, (out_channels, in_channels, 3, 3),
                                minval=-bound, maxval=bound, dtype=jnp.float32)
    bias = jax.random.uniform(kb, (out_channels,),
                              minval=-bound, maxval=bound, dtype=jnp.float32)
    return weight, bias


if __name__ == "__main__":
    key = jax.random.PRNGKey(0)
    k_x, k_p = jax.random.split(key)

    N, Cin, H, W = 4, 4, 16, 16    # batch_tile=2 -> 2 images/step, 2 grid steps
    Cout = 8

    x = jax.random.normal(k_x, (N, Cin, H, W), dtype=jnp.float32)
    weight, bias = init_params(k_p, Cin, Cout)

    out = jax.block_until_ready(dense_layer_forward(x, weight, bias))
    assert out.shape == (N, Cin + Cout, H, W), out.shape

    # Reference: ReplicationPad2d(1) + Conv2d(3x3) + ReLU + concat, all in f32.
    xp = jnp.pad(x, ((0, 0), (0, 0), (1, 1), (1, 1)), mode="edge")
    ref_conv = jax.lax.conv_general_dilated(
        xp, weight, window_strides=(1, 1), padding="VALID",
        dimension_numbers=("NCHW", "OIHW", "NCHW"))
    ref = jnp.concatenate(
        [x, jnp.maximum(ref_conv + bias[None, :, None, None], 0.0)], axis=1)

    # Passthrough channels are exact; conv channels use bf16 MXU operands (f32 acc).
    assert jnp.array_equal(out[:, :Cin], x)
    assert jnp.allclose(out[:, Cin:], ref[:, Cin:], atol=2e-2, rtol=2e-2)

    print("KERNEL_OK")
</pallas_src>

<mosaic_0001>
module attributes {stable_mosaic.version = 11 : i64} {
  func.func @_dense_layer_kernel(%arg0: i32, %arg1: memref<2x16x256xf32, #tpu.memory_space<vmem>>, %arg2: memref<8x144xbf16, #tpu.memory_space<vmem>>, %arg3: memref<8x1xf32, #tpu.memory_space<vmem>>, %arg4: memref<2x12x256xf32, #tpu.memory_space<vmem>>) attributes {dimension_semantics = [#tpu.dimension_semantics<parallel>], iteration_bounds = array<i64: 2>, scalar_prefetch = 0 : i64, scratch_operands = 0 : i64, tpu.core_type = #tpu.core_type<tc>, window_params = [{transform_indices = @transform_0, window_bounds = array<i64: 2, 16, 256>}, {pipeline_mode = #tpu.pipeline_mode<synchronous>, transform_indices = @transform_1, window_bounds = array<i64: 8, 144>}, {pipeline_mode = #tpu.pipeline_mode<synchronous>, transform_indices = @transform_2, window_bounds = array<i64: 8, 1>}, {transform_indices = @transform_3, window_bounds = array<i64: 2, 12, 256>}]} {
    %c0 = arith.constant 0 : index
    %c0_0 = arith.constant 0 : index
    %c0_1 = arith.constant 0 : index
    %0 = vector.load %arg1[%c0, %c0_0, %c0_1] : memref<2x16x256xf32, #tpu.memory_space<vmem>>, vector<2x16x256xf32>
    %1 = vector.extract_strided_slice %0 {offsets = [0, 0, 0], sizes = [2, 4, 256], strides = [1, 1, 1]} : vector<2x16x256xf32> to vector<2x4x256xf32>
    %c0_2 = arith.constant 0 : index
    %c0_3 = arith.constant 0 : index
    %c0_4 = arith.constant 0 : index
    %2 = vector.load %arg4[%c0_2, %c0_3, %c0_4] : memref<2x12x256xf32, #tpu.memory_space<vmem>>, vector<2x4x256xf32>
    tpu.vector_store %arg4[%c0_2, %c0_3, %c0_4], %1 {strides = array<i32>} : memref<2x12x256xf32, #tpu.memory_space<vmem>>, vector<2x4x256xf32>,
    %3 = arith.truncf %0 : vector<2x16x256xf32> to vector<2x16x256xbf16>
    %4 = tpu.iota {dimensions = array<i32: 2>} : vector<1x1x256xi32>
    %c15_i32 = arith.constant 15 : i32
    %5 = vector.broadcast %c15_i32 : i32 to vector<1x1x256xi32>
    %6 = arith.andi %4, %5 : vector<1x1x256xi32>
    %c0_i32 = arith.constant 0 : i32
    %7 = vector.broadcast %c0_i32 : i32 to vector<1x1x256xi32>
    %8 = arith.cmpi eq, %6, %7 : vector<1x1x256xi32>
    %c15_i32_5 = arith.constant 15 : i32
    %9 = vector.broadcast %c15_i32_5 : i32 to vector<1x1x256xi32>
    %10 = arith.cmpi eq, %6, %9 : vector<1x1x256xi32>
    %c16_i32 = arith.constant 16 : i32
    %11 = vector.broadcast %c16_i32 : i32 to vector<1x1x256xi32>
    %12 = arith.cmpi slt, %4, %11 : vector<1x1x256xi32>
    %c240_i32 = arith.constant 240 : i32
    %13 = vector.broadcast %c240_i32 : i32 to vector<1x1x256xi32>
    %14 = arith.cmpi sge, %4, %13 : vector<1x1x256xi32>
    %15 = vector.extract_strided_slice %3 {offsets = [0, 0, 255], sizes = [2, 16, 1], strides = [1, 1, 1]} : vector<2x16x256xbf16> to vector<2x16x1xbf16>
    %16 = vector.extract_strided_slice %3 {offsets = [0, 0, 0], sizes = [2, 16, 255], strides = [1, 1, 1]} : vector<2x16x256xbf16> to vector<2x16x255xbf16>
    %17 = tpu.concatenate %15, %16 in 2 : vector<2x16x1xbf16>, vector<2x16x255xbf16> -> vector<2x16x256xbf16>
    %18 = vector.shape_cast %8 : vector<1x1x256xi1> to vector<1x1x256xi1>
    %19 = vector.broadcast %18 : vector<1x1x256xi1> to vector<2x16x256xi1>
    %20 = arith.select %19, %3, %17 : vector<2x16x256xi1>, vector<2x16x256xbf16>
    %21 = vector.extract_strided_slice %3 {offsets = [0, 0, 1], sizes = [2, 16, 255], strides = [1, 1, 1]} : vector<2x16x256xbf16> to vector<2x16x255xbf16>
    %22 = vector.extract_strided_slice %3 {offsets = [0, 0, 0], sizes = [2, 16, 1], strides = [1, 1, 1]} : vector<2x16x256xbf16> to vector<2x16x1xbf16>
    %23 = tpu.concatenate %21, %22 in 2 : vector<2x16x255xbf16>, vector<2x16x1xbf16> -> vector<2x16x256xbf16>
    %24 = vector.shape_cast %10 : vector<1x1x256xi1> to vector<1x1x256xi1>
    %25 = vector.broadcast %24 : vector<1x1x256xi1> to vector<2x16x256xi1>
    %26 = arith.select %25, %3, %23 : vector<2x16x256xi1>, vector<2x16x256xbf16>
    %27 = vector.extract_strided_slice %20 {offsets = [0, 0, 240], sizes = [2, 16, 16], strides = [1, 1, 1]} : vector<2x16x256xbf16> to vector<2x16x16xbf16>
    %28 = vector.extract_strided_slice %20 {offsets = [0, 0, 0], sizes = [2, 16, 240], strides = [1, 1, 1]} : vector<2x16x256xbf16> to vector<2x16x240xbf16>
    %29 = tpu.concatenate %27, %28 in 2 : vector<2x16x16xbf16>, vector<2x16x240xbf16> -> vector<2x16x256xbf16>
    %30 = vector.shape_cast %12 : vector<1x1x256xi1> to vector<1x1x256xi1>
    %31 = vector.broadcast %30 : vector<1x1x256xi1> to vector<2x16x256xi1>
    %32 = arith.select %31, %20, %29 : vector<2x16x256xi1>, vector<2x16x256xbf16>
    %33 = vector.extract_strided_slice %3 {offsets = [0, 0, 240], sizes = [2, 16, 16], strides = [1, 1, 1]} : vector<2x16x256xbf16> to vector<2x16x16xbf16>
    %34 = vector.extract_strided_slice %3 {offsets = [0, 0, 0], sizes = [2, 16, 240], strides = [1, 1, 1]} : vector<2x16x256xbf16> to vector<2x16x240xbf16>
    %35 = tpu.concatenate %33, %34 in 2 : vector<2x16x16xbf16>, vector<2x16x240xbf16> -> vector<2x16x256xbf16>
    %36 = vector.shape_cast %12 : vector<1x1x256xi1> to vector<1x1x256xi1>
    %37 = vector.broadcast %36 : vector<1x1x256xi1> to vector<2x16x256xi1>
    %38 = arith.select %37, %3, %35 : vector<2x16x256xi1>, vector<2x16x256xbf16>
    %39 = vector.extract_strided_slice %26 {offsets = [0, 0, 240], sizes = [2, 16, 16], strides = [1, 1, 1]} : vector<2x16x256xbf16> to vector<2x16x16xbf16>
    %40 = vector.extract_strided_slice %26 {offsets = [0, 0, 0], sizes = [2, 16, 240], strides = [1, 1, 1]} : vector<2x16x256xbf16> to vector<2x16x240xbf16>
    %41 = tpu.concatenate %39, %40 in 2 : vector<2x16x16xbf16>, vector<2x16x240xbf16> -> vector<2x16x256xbf16>
    %42 = vector.shape_cast %12 : vector<1x1x256xi1> to vector<1x1x256xi1>
    %43 = vector.broadcast %42 : vector<1x1x256xi1> to vector<2x16x256xi1>
    %44 = arith.select %43, %26, %41 : vector<2x16x256xi1>, vector<2x16x256xbf16>
    %45 = vector.extract_strided_slice %20 {offsets = [0, 0, 16], sizes = [2, 16, 240], strides = [1, 1, 1]} : vector<2x16x256xbf16> to vector<2x16x240xbf16>
    %46 = vector.extract_strided_slice %20 {offsets = [0, 0, 0], sizes = [2, 16, 16], strides = [1, 1, 1]} : vector<2x16x256xbf16> to vector<2x16x16xbf16>
    %47 = tpu.concatenate %45, %46 in 2 : vector<2x16x240xbf16>, vector<2x16x16xbf16> -> vector<2x16x256xbf16>
    %48 = vector.shape_cast %14 : vector<1x1x256xi1> to vector<1x1x256xi1>
    %49 = vector.broadcast %48 : vector<1x1x256xi1> to vector<2x16x256xi1>
    %50 = arith.select %49, %20, %47 : vector<2x16x256xi1>, vector<2x16x256xbf16>
    %51 = vector.extract_strided_slice %3 {offsets = [0, 0, 16], sizes = [2, 16, 240], strides = [1, 1, 1]} : vector<2x16x256xbf16> to vector<2x16x240xbf16>
    %52 = vector.extract_strided_slice %3 {offsets = [0, 0, 0], sizes = [2, 16, 16], strides = [1, 1, 1]} : vector<2x16x256xbf16> to vector<2x16x16xbf16>
    %53 = tpu.concatenate %51, %52 in 2 : vector<2x16x240xbf16>, vector<2x16x16xbf16> -> vector<2x16x256xbf16>
    %54 = vector.shape_cast %14 : vector<1x1x256xi1> to vector<1x1x256xi1>
    %55 = vector.broadcast %54 : vector<1x1x256xi1> to vector<2x16x256xi1>
    %56 = arith.select %55, %3, %53 : vector<2x16x256xi1>, vector<2x16x256xbf16>
    %57 = vector.extract_strided_slice %26 {offsets = [0, 0, 16], sizes = [2, 16, 240], strides = [1, 1, 1]} : vector<2x16x256xbf16> to vector<2x16x240xbf16>
    %58 = vector.extract_strided_slice %26 {offsets = [0, 0, 0], sizes = [2, 16, 16], strides = [1, 1, 1]} : vector<2x16x256xbf16> to vector<2x16x16xbf16>
    %59 = tpu.concatenate %57, %58 in 2 : vector<2x16x240xbf16>, vector<2x16x16xbf16> -> vector<2x16x256xbf16>
    %60 = vector.shape_cast %14 : vector<1x1x256xi1> to vector<1x1x256xi1>
    %61 = vector.broadcast %60 : vector<1x1x256xi1> to vector<2x16x256xi1>
    %62 = arith.select %61, %26, %59 : vector<2x16x256xi1>, vector<2x16x256xbf16>
    %63 = tpu.concatenate %32, %38, %44, %20, %3, %26, %50, %56, %62 in 1 : vector<2x16x256xbf16>, vector<2x16x256xbf16>, vector<2x16x256xbf16>, vector<2x16x256xbf16>, vector<2x16x256xbf16>, vector<2x16x256xbf16>, vector<2x16x256xbf16>, vector<2x16x256xbf16>, vector<2x16x256xbf16> -> vector<2x144x256xbf16>
    %c0_6 = arith.constant 0 : index
    %c0_7 = arith.constant 0 : index
    %64 = vector.load %arg2[%c0_6, %c0_7] : memref<8x144xbf16, #tpu.memory_space<vmem>>, vector<8x144xbf16>
    %c0_8 = arith.constant 0 : index
    %c0_9 = arith.constant 0 : index
    %65 = vector.load %arg3[%c0_8, %c0_9] : memref<8x1xf32, #tpu.memory_space<vmem>>, vector<8x1xf32>
    %66 = vector.extract_strided_slice %63 {offsets = [0, 0, 0], sizes = [1, 144, 256], strides = [1, 1, 1]} : vector<2x144x256xbf16> to vector<1x144x256xbf16>
    %67 = vector.shape_cast %66 : vector<1x144x256xbf16> to vector<144x256xbf16>
    %cst = arith.constant dense<0.000000e+00> : vector<8x256xf32>
    %68 = tpu.matmul %64, %67, %cst {dimension_numbers = #tpu.dot_dimension_numbers<[1], [0], [0], [1], [0, 0, 1, 1], [], []>} : vector<8x144xbf16>, vector<144x256xbf16>, vector<8x256xf32> -> vector<8x256xf32>
    %69 = vector.broadcast %65 : vector<8x1xf32> to vector<8x256xf32>
    %70 = arith.addf %68, %69 : vector<8x256xf32>
    %cst_10 = arith.constant 0.000000e+00 : f32
    %71 = vector.broadcast %cst_10 : f32 to vector<8x256xf32>
    %72 = arith.maximumf %70, %71 : vector<8x256xf32>
    %c0_11 = arith.constant 0 : index
    %c4 = arith.constant 4 : index
    %c0_12 = arith.constant 0 : index
    %73 = vector.load %arg4[%c0_11, %c4, %c0_12] : memref<2x12x256xf32, #tpu.memory_space<vmem>>, vector<1x8x256xf32>
    %74 = vector.shape_cast %73 : vector<1x8x256xf32> to vector<8x256xf32>
    %75 = vector.shape_cast %72 : vector<8x256xf32> to vector<1x8x256xf32>
    tpu.vector_store %arg4[%c0_11, %c4, %c0_12], %75 {strides = array<i32>} : memref<2x12x256xf32, #tpu.memory_space<vmem>>, vector<1x8x256xf32>,
    %76 = vector.extract_strided_slice %63 {offsets = [1, 0, 0], sizes = [1, 144, 256], strides = [1, 1, 1]} : vector<2x144x256xbf16> to vector<1x144x256xbf16>
    %77 = vector.shape_cast %76 : vector<1x144x256xbf16> to vector<144x256xbf16>
    %cst_13 = arith.constant dense<0.000000e+00> : vector<8x256xf32>
    %78 = tpu.matmul %64, %77, %cst_13 {dimension_numbers = #tpu.dot_dimension_numbers<[1], [0], [0], [1], [0, 0, 1, 1], [], []>} : vector<8x144xbf16>, vector<144x256xbf16>, vector<8x256xf32> -> vector<8x256xf32>
    %79 = vector.broadcast %65 : vector<8x1xf32> to vector<8x256xf32>
    %80 = arith.addf %78, %79 : vector<8x256xf32>
    %cst_14 = arith.constant 0.000000e+00 : f32
    %81 = vector.broadcast %cst_14 : f32 to vector<8x256xf32>
    %82 = arith.maximumf %80, %81 : vector<8x256xf32>
    %c1 = arith.constant 1 : index
    %c4_15 = arith.constant 4 : index
    %c0_16 = arith.constant 0 : index
    %83 = vector.load %arg4[%c1, %c4_15, %c0_16] : memref<2x12x256xf32, #tpu.memory_space<vmem>>, vector<1x8x256xf32>
    %84 = vector.shape_cast %83 : vector<1x8x256xf32> to vector<8x256xf32>
    %85 = vector.shape_cast %82 : vector<8x256xf32> to vector<1x8x256xf32>
    tpu.vector_store %arg4[%c1, %c4_15, %c0_16], %85 {strides = array<i32>} : memref<2x12x256xf32, #tpu.memory_space<vmem>>, vector<1x8x256xf32>,
    return
  }
  func.func @transform_0(%arg0: i32) -> (i32, i32, i32) {
    %c0_i32 = arith.constant 0 : i32
    %c0_i32_0 = arith.constant 0 : i32
    %c0_i32_1 = arith.constant 0 : i32
    return %arg0, %c0_i32, %c0_i32_0 : i32, i32, i32
  }
  func.func @transform_1(%arg0: i32) -> (i32, i32) {
    %c0_i32 = arith.constant 0 : i32
    %c0_i32_0 = arith.constant 0 : i32
    %c0_i32_1 = arith.constant 0 : i32
    return %c0_i32, %c0_i32_0 : i32, i32
  }
  func.func @transform_2(%arg0: i32) -> (i32, i32) {
    %c0_i32 = arith.constant 0 : i32
    %c0_i32_0 = arith.constant 0 : i32
    %c0_i32_1 = arith.constant 0 : i32
    return %c0_i32, %c0_i32_0 : i32, i32
  }
  func.func @transform_3(%arg0: i32) -> (i32, i32, i32) {
    %c0_i32 = arith.constant 0 : i32
    %c0_i32_0 = arith.constant 0 : i32
    %c0_i32_1 = arith.constant 0 : i32
    return %arg0, %c0_i32, %c0_i32_0 : i32, i32, i32
  }
}

</mosaic_0001>

<llo_original>
// kernel: tpu_custom_call.1
$region0: #{tpu_custom_call.1}
  #allocation0 [shape = 'u32[]', space=smem, size = 0x4, offset = 0x4, fixed_abs, tag = 'smem constant byte address 0x4 - core index']
  #allocation1 [shape = 'u32[144,128]{1,0:T(1,128)}', space=vmem, size = 0x12000, scoped, tag = 'internal scratch']
  %s0 = inlined_call_operand.hbm [shape: f32[4,16,256], index: 0, kind: input, shape index: {}]
  %s1 = inlined_call_operand.vmem [shape: bf16[8,144], index: 1, kind: input, shape index: {}]
  %s2 = inlined_call_operand.vmem [shape: f32[8,1], index: 2, kind: input, shape index: {}]
  %s3 = inlined_call_operand.vmem [shape: f32[4,12,256], index: 3, kind: output, shape index: {}]
  %s4 = sld [smem:[#allocation0]]
  $region49: #{tpu_custom_call.1} parent=0
    _
  %s6 = ssub.s32 1, %s4
  %s7 = scalar_select 0, %s6, %s4
  $region1: #{tpu_custom_call.1} parent=0
    #allocation2 [shape = 'u8[65536]{0}', space=vmem, size = 0x10000, scoped, tag = 'input window, operand 0']
    #allocation3 [shape = 's32[2]{0}', space=sflag, size = 0x8, scoped, tag = 'scoped memory for tpu_custom_call.1']
    %8 = vsyncpa [#allocation3], 0
    %s9 = scalar_lea.sflag [#allocation3], 1
    %10 = vsyncpa %s9, 0
    loop: start=0, step=1, limit=4
    $region2: #{tpu_custom_call.1} parent=1 // loop_pre_header
      _
    $region3: #{tpu_custom_call.1} parent=1 // loop_header
      %s12 = sphi 0, %s16
      %p13 = scmp.ge.s32.totalorder %s12, 4
      %s22 = sphi 0, %s24
      %s25 = sphi 0, %s22
      %s26 = sphi 0, %s25
      %s42 = sphi 0, %s26
      %s46 = sphi 0, %s46
      %s48 = sphi 0, %s46
      %s49 = sphi 0, %s48
      %s63 = sphi 0, %s49
      %s67 = sphi 0, %s67
      %s69 = sphi 0, %s67
      %s70 = sphi 0, %s69
      %s84 = sphi 0, %s70
      %s90 = sphi 0, %s92
      %s93 = sphi 0, %s90
      %s94 = sphi 0, %s93
      %s110 = sphi 0, %s94
    $region4: #{tpu_custom_call.1} parent=1 // loop_header_branch
      %15 = sbr.rel (%p13) target = $region8
    $region5: #{tpu_custom_call.1} parent=1 // loop_body
      %s17 = ssub.s32 %s12, 1
      %s18 = ssub.s32 %s12, 2
      %s19 = sadd.s32 %s12, 1
      %s20 = ssub.s32 %s12, %s19
      %p21 = scmp.eq.s32.totalorder %s20, 0
      %s23 = sadd.s32 %s22, 1
      %s24 = scalar_select %p21, %s22, %s23
      %p27 = pneg %p21
      %p28 = scmp.eq.s32.totalorder %s12, 1
      %p29 = por %p27, %p28
      %p30 = scmp.ne.s32.totalorder %s22, %s25
      %p31 = scmp.eq.s32.totalorder %s12, 0
      %p32 = por %p30, %p31
      %p33 = scmp.ne.s32.totalorder %s22, %s25
      %p34 = scmp.eq.s32.totalorder %s17, 1
      %p35 = por %p33, %p34
      %p36 = scmp.ne.s32.totalorder %s25, %s26
      %p37 = scmp.eq.s32.totalorder %s17, 0
      %p38 = por %p36, %p37
      %p39 = scmp.ne.s32.totalorder %s25, %s26
      %p40 = scmp.eq.s32.totalorder %s18, 1
      %p41 = por %p39, %p40
      %p43 = scmp.ne.s32.totalorder %s26, %s42
      %p44 = scmp.eq.s32.totalorder %s18, 0
      %p45 = por %p43, %p44
      %s47 = sadd.s32 %s46, 1
      %p50 = scmp.eq.s32.totalorder %s12, 1
      %p51 = scmp.ne.s32.totalorder %s46, %s48
      %p52 = scmp.eq.s32.totalorder %s12, 0
      %p53 = por %p51, %p52
      %p54 = scmp.ne.s32.totalorder %s46, %s48
      %p55 = scmp.eq.s32.totalorder %s17, 1
      %p56 = por %p54, %p55
      %p57 = scmp.ne.s32.totalorder %s48, %s49
      %p58 = scmp.eq.s32.totalorder %s17, 0
      %p59 = por %p57, %p58
      %p60 = scmp.ne.s32.totalorder %s48, %s49
      %p61 = scmp.eq.s32.totalorder %s18, 1
      %p62 = por %p60, %p61
      %p64 = scmp.ne.s32.totalorder %s49, %s63
      %p65 = scmp.eq.s32.totalorder %s18, 0
      %p66 = por %p64, %p65
      %s68 = sadd.s32 %s67, 1
      %p71 = scmp.eq.s32.totalorder %s12, 1
      %p72 = scmp.ne.s32.totalorder %s67, %s69
      %p73 = scmp.eq.s32.totalorder %s12, 0
      %p74 = por %p72, %p73
      %p75 = scmp.ne.s32.totalorder %s67, %s69
      %p76 = scmp.eq.s32.totalorder %s17, 1
      %p77 = por %p75, %p76
      %p78 = scmp.ne.s32.totalorder %s69, %s70
      %p79 = scmp.eq.s32.totalorder %s17, 0
      %p80 = por %p78, %p79
      %p81 = scmp.ne.s32.totalorder %s69, %s70
      %p82 = scmp.eq.s32.totalorder %s18, 1
      %p83 = por %p81, %p82
      %p85 = scmp.ne.s32.totalorder %s70, %s84
      %p86 = scmp.eq.s32.totalorder %s18, 0
      %p87 = por %p85, %p86
      %s88 = ssub.s32 %s12, %s19
      %p89 = scmp.eq.s32.totalorder %s88, 0
      %s91 = sadd.s32 %s90, 1
      %s92 = scalar_select %p89, %s90, %s91
      %p95 = pneg %p89
      %p96 = scmp.eq.s32.totalorder %s12, 1
      %p97 = por %p95, %p96
      %p98 = scmp.ne.s32.totalorder %s90, %s93
      %p99 = scmp.eq.s32.totalorder %s12, 0
      %p100 = por %p98, %p99
      %p101 = scmp.ne.s32.totalorder %s90, %s93
      %p102 = scmp.eq.s32.totalorder %s17, 1
      %p103 = por %p101, %p102
      %p104 = scmp.ne.s32.totalorder %s93, %s94
      %p105 = scmp.eq.s32.totalorder %s17, 0
      %p106 = por %p104, %p105
      %p107 = scmp.ne.s32.totalorder %s93, %s94
      %p108 = scmp.eq.s32.totalorder %s18, 1
      %p109 = por %p107, %p108
      %p111 = scmp.ne.s32.totalorder %s94, %s110
      %p112 = scmp.eq.s32.totalorder %s18, 0
      %p113 = por %p111, %p112
      %p114 = scmp.le.s32.totalorder 1, %s12
      %p115 = scmp.lt.s32.totalorder %s12, 3
      %p116 = pnand %p114, %p115
      %p117 = pneg %p116
      // Predicated region
      $region9: #{tpu_custom_call.1} parent=5 // pred_check
        _
      $region10: #{tpu_custom_call.1} parent=5 // pred_check_branch
        %119 = sbr.rel (%p116) target = $region12
      $region11: #{tpu_custom_call.1} parent=5 // pred_region
        %s120 = ssub.s32 %s12, 1
        // Predicated region
        $region13: #{tpu_custom_call.1} parent=11 // pred_check
          %p121 = pneg %p59
        $region14: #{tpu_custom_call.1} parent=11 // pred_check_branch
          %123 = sbr.rel (%p121) target = $region16
        $region15: #{tpu_custom_call.1} parent=11 // pred_region
          _
        $region16: #{tpu_custom_call.1} parent=11 // pred_fallthru
          _
        // Predicated region
        $region17: #{tpu_custom_call.1} parent=11 // pred_check
          %p124 = pneg %p80
        $region18: #{tpu_custom_call.1} parent=11 // pred_check_branch
          %126 = sbr.rel (%p124) target = $region20
        $region19: #{tpu_custom_call.1} parent=11 // pred_region
          _
        $region20: #{tpu_custom_call.1} parent=11 // pred_fallthru
          _
      $region12: #{tpu_custom_call.1} parent=5 // pred_fallthru
        _
      %p127 = scmp.lt.s32.totalorder %s12, 2
      // Predicated region
      $region21: #{tpu_custom_call.1} parent=5 // pred_check
        %p128 = pneg %p127
      $region22: #{tpu_custom_call.1} parent=5 // pred_check_branch
        %130 = sbr.rel (%p128) target = $region24
      $region23: #{tpu_custom_call.1} parent=5 // pred_region
        // Predicated region
        $region25: #{tpu_custom_call.1} parent=23 // pred_check
          %p131 = pneg %p32
        $region26: #{tpu_custom_call.1} parent=23 // pred_check_branch
          %133 = sbr.rel (%p131) target = $region28
        $region27: #{tpu_custom_call.1} parent=23 // pred_region
          %s134 = sand.u32 %s22, 1
          %s135 = scalar_lea.sflag [#allocation3], %s134
          %s136 = sand.u32 %s22, 1
          %s137 = smul.addr %s136, 64
          %s138 = scalar_lea.vmem [#allocation2], %s137
          %s139 = smul.u32 2, %s12
          %s141 = ssub.s32 1024, 1024
          %142 = vsyncadd %s135, %s141
          %s143 = smul.addr %s139, 4
          %s144 = smul.addr %s143, 128
          %s145 = scalar_lea.hbm %s0, %s144
          %s146 = sshll.u32 %s138, 4
          %s147 = int_to_ptr.vmem [resolvable:$true] %s146
          %152 = dma.hbm_to_vmem [thread:$0]  %s145, 1024, %s147, %s135, 256, 256, 16
        $region28: #{tpu_custom_call.1} parent=23 // pred_fallthru
          _
      $region24: #{tpu_custom_call.1} parent=5 // pred_fallthru
        _
      %p153 = scmp.le.s32.totalorder 1, %s12
      %p154 = scmp.lt.s32.totalorder %s12, 3
      %p155 = pnand %p153, %p154
      %p156 = pneg %p155
      // Predicated region
      $region29: #{tpu_custom_call.1} parent=5 // pred_check
        _
      $region30: #{tpu_custom_call.1} parent=5 // pred_check_branch
        %158 = sbr.rel (%p155) target = $region32
      $region31: #{tpu_custom_call.1} parent=5 // pred_region
        %s159 = ssub.s32 %s12, 1
        %s160 = sand.u32 %s25, 1
        %s161 = scalar_lea.sflag [#allocation3], %s160
        %s162 = sand.u32 %s25, 1
        %s163 = smul.addr %s162, 64
        %s164 = scalar_lea.vmem [#allocation2], %s163
        // Predicated region
        $region33: #{tpu_custom_call.1} parent=31 // pred_check
          %p165 = pneg %p38
        $region34: #{tpu_custom_call.1} parent=31 // pred_check_branch
          %167 = sbr.rel (%p165) target = $region36
        $region35: #{tpu_custom_call.1} parent=31 // pred_region
          %168 = dma.done %s161, 1024
        $region36: #{tpu_custom_call.1} parent=31 // pred_fallthru
          _
        %s169 = sand.u32 %s25, 1
        %s170 = scalar_lea.sflag [#allocation3], %s169
        %s171 = sand.u32 %s25, 1
        %s172 = smul.addr %s171, 64
        %s173 = scalar_lea.vmem [#allocation2], %s172
        %p174 = pneg %p38
        %p175 = pneg %p35
        %p176 = pneg %p59
        %p177 = pneg %p56
        %p178 = pneg %p80
        %p179 = pneg %p77
        %p180 = pneg %p106
        %p181 = pneg %p103
        %s182 = smul.u32 2, %s17
        %p183 = scmp.lt.s32.totalorder %s182, 3
        %s184 = scalar_select %p183, %s182, 3
        %s185 = smul.addr %s184, 4
        %s186 = smul.addr %s185, 8
        %s187 = scalar_lea.vmem %s3, %s186
        %s188 = smul.u32 2, %s17
        %s189 = smul.u32 2, %s17
        %p190 = scmp.lt.s32.totalorder %s189, 3
        %s191 = scalar_select %p190, %s189, 3
        %s192 = smul.addr %s191, 4
        %s193 = smul.addr %s192, 8
        %s194 = scalar_lea.vmem %s3, %s193
        %s195 = smul.u32 2, %s17
        %v199 = vld [vmem:[%s164] sm:$0xff]
        %v200 = vld [vmem:[%s164 + $0x8] sm:$0xff]
        %v201 = vld [vmem:[%s164 + $0x10] sm:$0xff]
        %v202 = vld [vmem:[%s164 + $0x18] sm:$0xff]
        %v203 = vld [vmem:[%s164 + $0x20] sm:$0xff]
        %v204 = vld [vmem:[%s164 + $0x28] sm:$0xff]
        %v205 = vld [vmem:[%s164 + $0x30] sm:$0xff]
        %v206 = vld [vmem:[%s164 + $0x38] sm:$0xff]
        %207 = vst [vmem:[%s194] sm:$0xf] %v199
        %208 = vst [vmem:[%s194 + $0x8] sm:$0xf] %v200
        %209 = vst [vmem:[%s194 + $0x20] sm:$0xf] %v203
        %210 = vst [vmem:[%s194 + $0x28] sm:$0xf] %v204
        %v211 = vpack.c.bf16 %v201, %v199
        %v212 = vpack.c.bf16 %v202, %v200
        %v213 = vpack.c.bf16 %v205, %v203
        %v214 = vpack.c.bf16 %v206, %v204
        %v215 = vlaneseq
        %v216 = vand.u32 %v215, 127
        %v217 = vadd.s32 %v216, 128
        %v218 = vand.u32 %v216, 15
        %v219 = vand.u32 %v217, 15
        %vm220 = vcmp.eq.s32.totalorder %v218, 0
        %vm221 = vcmp.eq.s32.totalorder %v219, 0
        %vm222 = vcmp.eq.s32.totalorder %v218, 15
        %vm223 = vcmp.eq.s32.totalorder %v219, 15
        %vm224 = vcmp.lt.s32.totalorder %v216, 16
        %vm225 = vcmp.lt.s32.totalorder %v217, 16
        %vm226 = vcmp.ge.s32.totalorder %v216, 240
        %vm227 = vcmp.ge.s32.totalorder %v217, 240
        %230 = vrot.lane.b32.xlu0 %v212, 1
        %v231 = vpop.permute.xlu0 %230
        %232 = vrot.lane.b32.xlu0 %v214, 1
        %v233 = vpop.permute.xlu0 %232
        %236 = vrot.lane.b32.xlu0 %v211, 1
        %v237 = vpop.permute.xlu0 %236
        %238 = vrot.lane.b32.xlu0 %v213, 1
        %v239 = vpop.permute.xlu0 %238
        %vm240 = vcmask 7168
        %v241 = vsel %vm240, %v237, %v231
        %v242 = vsel %vm240, %v239, %v233
        %vm245 = vcmask 7168
        %v248 = vsel %vm245, %v231, %v237
        %v252 = vsel %vm245, %v233, %v239
        %v254 = vsel %vm220, 1, 0
        %v255 = vsel %vm221, 1, 0
        %vm256 = vcmp.eq.s32.totalorder %v254, 1
        %vm257 = vcmp.eq.s32.totalorder %v255, 1
        %vm258 = vmpackc.low %vm257, %vm256
        %v259 = vsel %vm258, 65537, 0
        %v260 = vlaneseq
        %v261 = vshrl.u32 %v260, 7
        %v262 = vsub.s32 0, %v261
        %v263 = vrot.slane %v259, %v262
        %v264 = vlaneseq
        %v265 = vshrl.u32 %v264, 7
        %v266 = vsub.s32 4, %v265
        %v267 = vrot.slane %v259, %v266
        %vm268 = vcmp.ne.s16.totalorder %v263, 0
        %vm269 = vcmp.ne.s16.totalorder %v267, 0
        %v270 = vsel %vm268, %v211, %v248
        %v271 = vsel %vm269, %v212, %v241
        %v272 = vsel %vm268, %v213, %v252
        %v273 = vsel %vm269, %v214, %v242
        %274 = vrot.lane.b32.xlu0 %v211, 127
        %v275 = vpop.permute.xlu0 %274
        %276 = vrot.lane.b32.xlu0 %v212, 127
        %v277 = vpop.permute.xlu0 %276
        %278 = vrot.lane.b32.xlu0 %v213, 127
        %v279 = vpop.permute.xlu0 %278
        %280 = vrot.lane.b32.xlu0 %v214, 127
        %v281 = vpop.permute.xlu0 %280
        %vm282 = vcmask 1039360
        %v283 = vsel %vm282, %v275, %v277
        %v284 = vsel %vm282, %v279, %v281
        %vm287 = vcmask 1039360
        %v290 = vsel %vm287, %v277, %v275
        %v294 = vsel %vm287, %v281, %v279
        %v296 = vsel %vm222, 1, 0
        %v297 = vsel %vm223, 1, 0
        %vm298 = vcmp.eq.s32.totalorder %v296, 1
        %vm299 = vcmp.eq.s32.totalorder %v297, 1
        %vm300 = vmpackc.low %vm299, %vm298
        %v301 = vsel %vm300, 65537, 0
        %v302 = vlaneseq
        %v303 = vshrl.u32 %v302, 7
        %v304 = vsub.s32 0, %v303
        %v305 = vrot.slane %v301, %v304
        %v306 = vlaneseq
        %v307 = vshrl.u32 %v306, 7
        %v308 = vsub.s32 4, %v307
        %v309 = vrot.slane %v301, %v308
        %vm310 = vcmp.ne.s16.totalorder %v305, 0
        %vm311 = vcmp.ne.s16.totalorder %v309, 0
        %v312 = vsel %vm310, %v211, %v283
        %v313 = vsel %vm311, %v212, %v290
        %v314 = vsel %vm310, %v213, %v284
        %v315 = vsel %vm311, %v214, %v294
        %318 = vrot.lane.b32.xlu0 %v271, 16
        %v319 = vpop.permute.xlu0 %318
        %320 = vrot.lane.b32.xlu0 %v273, 16
        %v321 = vpop.permute.xlu0 %320
        %324 = vrot.lane.b32.xlu0 %v270, 16
        %v325 = vpop.permute.xlu0 %324
        %326 = vrot.lane.b32.xlu0 %v272, 16
        %v327 = vpop.permute.xlu0 %326
        %vm328 = vcmask 130048
        %v329 = vsel %vm328, %v325, %v319
        %v330 = vsel %vm328, %v327, %v321
        %vm333 = vcmask 130048
        %v336 = vsel %vm333, %v319, %v325
        %v340 = vsel %vm333, %v321, %v327
        %v342 = vsel %vm224, 1, 0
        %v343 = vsel %vm225, 1, 0
        %vm344 = vcmp.eq.s32.totalorder %v342, 1
        %vm345 = vcmp.eq.s32.totalorder %v343, 1
        %vm346 = vmpackc.low %vm345, %vm344
        %v347 = vsel %vm346, 65537, 0
        %v348 = vlaneseq
        %v349 = vshrl.u32 %v348, 7
        %v350 = vsub.s32 0, %v349
        %v351 = vrot.slane %v347, %v350
        %v352 = vlaneseq
        %v353 = vshrl.u32 %v352, 7
        %v354 = vsub.s32 4, %v353
        %v355 = vrot.slane %v347, %v354
        %vm356 = vcmp.ne.s16.totalorder %v351, 0
        %vm357 = vcmp.ne.s16.totalorder %v355, 0
        %v358 = vsel %vm356, %v270, %v336
        %v359 = vsel %vm357, %v271, %v329
        %v360 = vsel %vm356, %v272, %v340
        %v361 = vsel %vm357, %v273, %v330
        %362 = vrot.lane.b32.xlu0 %v212, 16
        %v363 = vpop.permute.xlu0 %362
        %364 = vrot.lane.b32.xlu0 %v214, 16
        %v365 = vpop.permute.xlu0 %364
        %366 = vrot.lane.b32.xlu0 %v211, 16
        %v367 = vpop.permute.xlu0 %366
        %368 = vrot.lane.b32.xlu0 %v213, 16
        %v369 = vpop.permute.xlu0 %368
        %v370 = vsel %vm328, %v367, %v363
        %v371 = vsel %vm328, %v369, %v365
        %v376 = vsel %vm333, %v363, %v367
        %v380 = vsel %vm333, %v365, %v369
        %v382 = vsel %vm356, %v211, %v376
        %v383 = vsel %vm357, %v212, %v370
        %v384 = vsel %vm356, %v213, %v380
        %v385 = vsel %vm357, %v214, %v371
        %388 = vrot.lane.b32.xlu0 %v313, 16
        %v389 = vpop.permute.xlu0 %388
        %390 = vrot.lane.b32.xlu0 %v315, 16
        %v391 = vpop.permute.xlu0 %390
        %394 = vrot.lane.b32.xlu0 %v312, 16
        %v395 = vpop.permute.xlu0 %394
        %396 = vrot.lane.b32.xlu0 %v314, 16
        %v397 = vpop.permute.xlu0 %396
        %v398 = vsel %vm328, %v395, %v389
        %v399 = vsel %vm328, %v397, %v391
        %v404 = vsel %vm333, %v389, %v395
        %v408 = vsel %vm333, %v391, %v397
        %v410 = vsel %vm356, %v312, %v404
        %v411 = vsel %vm357, %v313, %v398
        %v412 = vsel %vm356, %v314, %v408
        %v413 = vsel %vm357, %v315, %v399
        %414 = vrot.lane.b32.xlu0 %v270, 112
        %v415 = vpop.permute.xlu0 %414
        %416 = vrot.lane.b32.xlu0 %v271, 112
        %v417 = vpop.permute.xlu0 %416
        %418 = vrot.lane.b32.xlu0 %v272, 112
        %v419 = vpop.permute.xlu0 %418
        %420 = vrot.lane.b32.xlu0 %v273, 112
        %v421 = vpop.permute.xlu0 %420
        %vm422 = vcmask 916480
        %v423 = vsel %vm422, %v415, %v417
        %v424 = vsel %vm422, %v419, %v421
        %vm427 = vcmask 916480
        %v430 = vsel %vm427, %v417, %v415
        %v434 = vsel %vm427, %v421, %v419
        %v436 = vsel %vm226, 1, 0
        %v437 = vsel %vm227, 1, 0
        %vm438 = vcmp.eq.s32.totalorder %v436, 1
        %vm439 = vcmp.eq.s32.totalorder %v437, 1
        %vm440 = vmpackc.low %vm439, %vm438
        %v441 = vsel %vm440, 65537, 0
        %v442 = vlaneseq
        %v443 = vshrl.u32 %v442, 7
        %v444 = vsub.s32 0, %v443
        %v445 = vrot.slane %v441, %v444
        %v446 = vlaneseq
        %v447 = vshrl.u32 %v446, 7
        %v448 = vsub.s32 4, %v447
        %v449 = vrot.slane %v441, %v448
        %vm450 = vcmp.ne.s16.totalorder %v445, 0
        %vm451 = vcmp.ne.s16.totalorder %v449, 0
        %v452 = vsel %vm450, %v270, %v423
        %v453 = vsel %vm451, %v271, %v430
        %v454 = vsel %vm450, %v272, %v424
        %v455 = vsel %vm451, %v273, %v434
        %456 = vrot.lane.b32.xlu0 %v211, 112
        %v457 = vpop.permute.xlu0 %456
        %458 = vrot.lane.b32.xlu0 %v212, 112
        %v459 = vpop.permute.xlu0 %458
        %460 = vrot.lane.b32.xlu0 %v213, 112
        %v461 = vpop.permute.xlu0 %460
        %462 = vrot.lane.b32.xlu0 %v214, 112
        %v463 = vpop.permute.xlu0 %462
        %v464 = vsel %vm422, %v457, %v459
        %v465 = vsel %vm422, %v461, %v463
        %v470 = vsel %vm427, %v459, %v457
        %v474 = vsel %vm427, %v463, %v461
        %v476 = vsel %vm450, %v211, %v464
        %v477 = vsel %vm451, %v212, %v470
        %v478 = vsel %vm450, %v213, %v465
        %v479 = vsel %vm451, %v214, %v474
        %480 = vrot.lane.b32.xlu0 %v312, 112
        %v481 = vpop.permute.xlu0 %480
        %482 = vrot.lane.b32.xlu0 %v313, 112
        %v483 = vpop.permute.xlu0 %482
        %484 = vrot.lane.b32.xlu0 %v314, 112
        %v485 = vpop.permute.xlu0 %484
        %486 = vrot.lane.b32.xlu0 %v315, 112
        %v487 = vpop.permute.xlu0 %486
        %v488 = vsel %vm422, %v481, %v483
        %v489 = vsel %vm422, %v485, %v487
        %v494 = vsel %vm427, %v483, %v481
        %v498 = vsel %vm427, %v487, %v485
        %v500 = vsel %vm450, %v312, %v488
        %v501 = vsel %vm451, %v313, %v494
        %v502 = vsel %vm450, %v314, %v489
        %v503 = vsel %vm451, %v315, %v498
        %v504 = vld [vmem:[%s1] sm:$0xff]
        %v505 = vld [vmem:[%s2] sm:$0xff]
        %507 = vset.pattern.permute.xlu0 0
        %508 = vperm.xlu0 %507, %v505
        %v509 = vpop.permute.xlu0 %508
        %v512 = vunpack.c.l.b16 %v504
        %v513 = vunpack.c.h.b16 %v504
        %v514 = vpack.c.b16 %v512, %v512
        %v515 = vpack.c.b16 %v513, %v513
        %v518 = vsel %vm333, %v515, 0
        %520 = vmatprep.subr.bf16.mxu0 %v359
        %521 = vmatpush1.bf16.msra.mxu0 %v358
        %522 = vmatprep.subr.bf16.mxu0 %v383
        %523 = vmatpush1.bf16.msra.mxu0 %v382
        %524 = vmatprep.subr.bf16.mxu0 %v411
        %525 = vmatpush1.bf16.msra.mxu0 %v410
        %526 = vmatprep.subr.bf16.mxu0 %v271
        %527 = vmatpush1.bf16.msra.mxu0 %v270
        %528 = vmatprep.subr.bf16.mxu0 %v212
        %529 = vmatpush1.bf16.msra.mxu0 %v211
        %530 = vmatprep.subr.bf16.mxu0 %v313
        %531 = vmatpush1.bf16.msra.mxu0 %v312
        %532 = vmatprep.subr.bf16.mxu0 %v453
        %533 = vmatpush1.bf16.msra.mxu0 %v452
        %534 = vmatprep.subr.bf16.mxu0 %v477
        %535 = vmatpush1.bf16.msra.mxu0 %v476
        %536 = vmatprep.subr.bf16.mxu0 %v501
        %537 = vmatpush1.bf16.msra.mxu0 %v500
        %538 = vmatprep.subr.bf16.mxu0 0
        %539 = vmatpush1.bf16.msra.mxu0 0
        %540 = vmatprep.subr.bf16.mxu0 0
        %541 = vmatpush1.bf16.msra.mxu0 0
        %542 = vmatprep.subr.bf16.mxu0 0
        %543 = vmatpush1.bf16.msra.mxu0 0
        %544 = vmatprep.subr.bf16.mxu0 0
        %545 = vmatpush1.bf16.msra.mxu0 0
        %546 = vmatprep.subr.bf16.mxu0 0
        %547 = vmatpush1.bf16.msra.mxu0 0
        %548 = vmatprep.subr.bf16.mxu0 0
        %549 = vmatpush1.bf16.msra.mxu0 0
        %550 = vmatprep.subr.bf16.mxu0 0
        %551 = vmatpush1.bf16.msra.mxu0 0
        %552 = vmatprep.mubr.bf16.mxu0 %v518
        %553 = vmatmul.mubr.bf16.gmra.mrb[0].mxu0 %v514
        %v554 = vpop.f32.mrb[0].mxu0
        %v555 = vadd.f32 %v509, %v554
        %v556 = vpop.f32.mrb[0].mxu0
        %v557 = vadd.f32 %v509, %v556
        %v558 = vpop.f32.mrb[0].mxu0
        %v559 = vpop.f32.mrb[0].mxu0
        %560 = vdwg.mxu0
        %v561 = vmax.f32 %v555, 0.0
        %v562 = vmax.f32 %v557, 0.0
        %v565 = vrot.slane %v561, 4
        %v566 = vrot.slane %v562, 4
        %569 = vst [vmem:[%s194] sm:$0xf0] %v565
        %570 = vst [vmem:[%s194 + $0x8] sm:$0xf0] %v566
        %571 = vst [vmem:[%s194 + $0x10] sm:$0xf] %v565
        %572 = vst [vmem:[%s194 + $0x18] sm:$0xf] %v566
        %573 = vmatprep.subr.bf16.mxu0 %v361
        %574 = vmatpush1.bf16.msra.mxu0 %v360
        %575 = vmatprep.subr.bf16.mxu0 %v385
        %576 = vmatpush1.bf16.msra.mxu0 %v384
        %577 = vmatprep.subr.bf16.mxu0 %v413
        %578 = vmatpush1.bf16.msra.mxu0 %v412
        %579 = vmatprep.subr.bf16.mxu0 %v273
        %580 = vmatpush1.bf16.msra.mxu0 %v272
        %581 = vmatprep.subr.bf16.mxu0 %v214
        %582 = vmatpush1.bf16.msra.mxu0 %v213
        %583 = vmatprep.subr.bf16.mxu0 %v315
        %584 = vmatpush1.bf16.msra.mxu0 %v314
        %585 = vmatprep.subr.bf16.mxu0 %v455
        %586 = vmatpush1.bf16.msra.mxu0 %v454
        %587 = vmatprep.subr.bf16.mxu0 %v479
        %588 = vmatpush1.bf16.msra.mxu0 %v478
        %589 = vmatprep.subr.bf16.mxu0 %v503
        %590 = vmatpush1.bf16.msra.mxu0 %v502
        %591 = vmatprep.subr.bf16.mxu0 0
        %592 = vmatpush1.bf16.msra.mxu0 0
        %593 = vmatprep.subr.bf16.mxu0 0
        %594 = vmatpush1.bf16.msra.mxu0 0
        %595 = vmatprep.subr.bf16.mxu0 0
        %596 = vmatpush1.bf16.msra.mxu0 0
        %597 = vmatprep.subr.bf16.mxu0 0
        %598 = vmatpush1.bf16.msra.mxu0 0
        %599 = vmatprep.subr.bf16.mxu0 0
        %600 = vmatpush1.bf16.msra.mxu0 0
        %601 = vmatprep.subr.bf16.mxu0 0
        %602 = vmatpush1.bf16.msra.mxu0 0
        %603 = vmatprep.subr.bf16.mxu0 0
        %604 = vmatpush1.bf16.msra.mxu0 0
        %605 = vmatprep.mubr.bf16.mxu0 %v518
        %606 = vmatmul.mubr.bf16.gmra.mrb[0].mxu0 %v514
        %v607 = vpop.f32.mrb[0].mxu0
        %v608 = vadd.f32 %v509, %v607
        %v609 = vpop.f32.mrb[0].mxu0
        %v610 = vadd.f32 %v509, %v609
        %v611 = vpop.f32.mrb[0].mxu0
        %v612 = vpop.f32.mrb[0].mxu0
        %613 = vdwg.mxu0
        %v614 = vmax.f32 %v608, 0.0
        %v615 = vmax.f32 %v610, 0.0
        %v618 = vrot.slane %v614, 4
        %v619 = vrot.slane %v615, 4
        %s622 = scalar_lea.vmem %s194, 32
        %623 = vst [vmem:[%s622] sm:$0xf0] %v618
        %624 = vst [vmem:[%s622 + $0x8] sm:$0xf0] %v619
        %625 = vst [vmem:[%s622 + $0x10] sm:$0xf] %v618
        %626 = vst [vmem:[%s622 + $0x18] sm:$0xf] %v619
        %s627 = smul.u32 2, %s17
        %p628 = scmp.lt.s32.totalorder %s627, 3
        %s629 = scalar_select %p628, %s627, 3
        %s630 = smul.addr %s629, 4
        %s631 = smul.addr %s630, 8
        %s632 = scalar_lea.vmem %s3, %s631
        // Predicated region
        $region37: #{tpu_custom_call.1} parent=31 // pred_check
          %p633 = pneg %p103
        $region38: #{tpu_custom_call.1} parent=31 // pred_check_branch
          %635 = sbr.rel (%p633) target = $region40
        $region39: #{tpu_custom_call.1} parent=31 // pred_region
          %s636 = smul.u32 2, %s17
        $region40: #{tpu_custom_call.1} parent=31 // pred_fallthru
          _
      $region32: #{tpu_custom_call.1} parent=5 // pred_fallthru
        _
      %p637 = scmp.le.s32.totalorder 2, %s12
      // Predicated region
      $region41: #{tpu_custom_call.1} parent=5 // pred_check
        %p638 = pneg %p637
      $region42: #{tpu_custom_call.1} parent=5 // pred_check_branch
        %640 = sbr.rel (%p638) target = $region44
      $region43: #{tpu_custom_call.1} parent=5 // pred_region
        %s641 = ssub.s32 %s12, 2
        // Predicated region
        $region45: #{tpu_custom_call.1} parent=43 // pred_check
          %p642 = pneg %p109
        $region46: #{tpu_custom_call.1} parent=43 // pred_check_branch
          %644 = sbr.rel (%p642) target = $region48
        $region47: #{tpu_custom_call.1} parent=43 // pred_region
          %s645 = smul.u32 2, %s18
          %p646 = scmp.lt.s32.totalorder %s645, 3
          %s647 = scalar_select %p646, %s645, 3
          %s648 = smul.addr %s647, 4
          %s649 = smul.addr %s648, 8
          %s650 = scalar_lea.vmem %s3, %s649
        $region48: #{tpu_custom_call.1} parent=43 // pred_fallthru
          _
      $region44: #{tpu_custom_call.1} parent=5 // pred_fallthru
        _
    $region6: #{tpu_custom_call.1} parent=1 // loop_footer
      %s16 = sadd.s32 1, %s12
    $region7: #{tpu_custom_call.1} parent=1 // loop_footer_branch
      %11 = sbr.rel target = $region3
    $region8: #{tpu_custom_call.1} parent=1 // loop_exit
      _
    %651 = vsyncpa [#allocation3], 1
    %s652 = scalar_lea.sflag [#allocation3], 1
    %653 = vsyncpa %s652, 1

</llo_original>
